<compile_context>
chip_gen: v6e
topology: v6e:2x2x1
jax: 0.10.0
libtpu: 0.0.40
codegen_flags: <defaults>
</compile_context>

<pallas_src>
import jax
import jax.numpy as jnp
from jax.experimental import pallas as pl
from jax.experimental.pallas import tpu as pltpu


def _ffn_kernel(x_ref, w1_ref, b1_ref, w2_ref, b2_ref, o_ref, acc_ref):
    k = pl.program_id(1)

    @pl.when(k == 0)
    def _init():
        # Fold b2 into the accumulator init (no separate add after the 2nd matmul).
        acc_ref[...] = jnp.broadcast_to(b2_ref[...], acc_ref.shape).astype(jnp.float32)

    # fc1 chunk: (tm, d_model) @ (d_model, tk) -> (tm, tk), f32 accumulation on MXU.
    h = jnp.dot(x_ref[...], w1_ref[...], preferred_element_type=jnp.float32)
    h = jnp.maximum(h + b1_ref[...], 0.0)          # bias + ReLU in f32
    # dropout == identity (eval mode). TODO(synk): training-mode dropout mask.

    # fc2 chunk: (tm, tk) @ (tk, d_model) -> (tm, d_model), accumulate in f32.
    acc_ref[...] += jnp.dot(h.astype(w2_ref.dtype), w2_ref[...],
                            preferred_element_type=jnp.float32)

    @pl.when(k == pl.num_programs(1) - 1)
    def _store():
        o_ref[...] = acc_ref[...].astype(o_ref.dtype)


def _round_up(x, m):
    return -(-x // m) * m


def _vmem_budget():
    """Usable VMEM: ~75% of physical capacity (~48 MiB of 64 MiB/TC on v7x,
    ~96 MiB of 128 MiB on v5e/v6e), leaving headroom for compiler scratch."""
    try:
        cap = int(pltpu.get_tpu_info().vmem_capacity_bytes)
    except Exception:
        cap = 64 << 20                     # conservative (v7x-sized) fallback
    return (cap * 3) // 4


def _tile_vmem_bytes(rt, kt, d_model, xb, wb, ob):
    blk = (rt * d_model * xb               # x tile
           + d_model * kt * wb             # W1^T tile
           + kt * 4                        # b1 tile (f32)
           + kt * d_model * wb             # W2^T tile
           + d_model * 4                   # b2 tile (f32)
           + rt * d_model * ob)            # out tile
    # 2-deep pipeline on every streamed block + resident f32 accumulator
    # + the f32 intermediate h (rt, kt) held between the two matmuls.
    return 2 * blk + rt * d_model * 4 + rt * kt * 4


def _pick_row_tile(n, fits):
    """Largest 16-aligned row tile (<=1024) that fits the VMEM budget and keeps
    padding waste bounded; never returns a non-8/16-aligned degenerate tile."""
    n16 = _round_up(n, 16)
    if n16 <= 1024:
        cands = [n16, _round_up(-(-n16 // 2), 16), 256, 128, 64, 32, 16]
    else:
        cands = [1024, 768, 512, 384, 256, 128, 64, 32, 16]
    cands = list(dict.fromkeys(t for t in cands if t <= n16)) or [n16]
    max_waste = max(n // 8, 15)
    for t in cands:
        if fits(t) and _round_up(n, t) - n <= max_waste:
            return t
    for t in cands:
        if fits(t):
            return t
    return cands[-1]


def _select_tiles(n, d_model, ffn_hidden, xb, wb, ob, budget):
    """Prefer a weights-resident single k step (weights DMA'd once) when both
    weight matrices fit in ~1/3 of the usable VMEM; otherwise stream 256/128-
    aligned k slices. Row tiles as large as budget / padding allow (weights are
    re-streamed once per row tile when the k axis is split)."""
    resident_ok = 2 * d_model * ffn_hidden * wb <= budget // 3

    k_cands = [ffn_hidden] if resident_ok else []
    for align in (256, 128):                 # 256-aligned first for v6e/v7x MXU
        t = ((ffn_hidden - 1) // align) * align
        while t >= align:
            if ffn_hidden % t == 0 and t not in k_cands:
                k_cands.append(t)
            t -= align
    if ffn_hidden not in k_cands:
        k_cands.append(ffn_hidden)           # ragged ffn_hidden: one full-width step

    best = None
    for kt in k_cands:
        def fits(rt, _kt=kt):
            return _tile_vmem_bytes(rt, _kt, d_model, xb, wb, ob) <= budget
        rt = _pick_row_tile(n, fits)
        if fits(rt):
            return rt, kt
        if best is None:
            best = (rt, kt)
    return best


def positionwise_ffn(x, w1, b1, w2, b2, *, row_tile=None, k_tile=None,
                     compute_dtype=jnp.bfloat16):
    """y = relu(x @ w1.T + b1) @ w2.T + b2   (PyTorch nn.Linear weight layout).

    x: (batch, seq, d_model); w1: (ffn_hidden, d_model); w2: (d_model, ffn_hidden).
    compute_dtype: matmul input dtype (default bf16; accumulation/bias/ReLU are f32).
    """
    batch, seq, d_model = x.shape
    ffn_hidden = w1.shape[0]
    assert w1.shape == (ffn_hidden, d_model)
    assert w2.shape == (d_model, ffn_hidden)
    n = batch * seq
    out_dtype = x.dtype

    cdt = compute_dtype if compute_dtype is not None else x.dtype
    # Pre-transpose once per call (fuses with the cast) so both in-kernel
    # contractions are (M,K)@(K,N): no per-tile RHS transpose feeding the MXU.
    w1t = jnp.transpose(w1).astype(cdt)                 # (d_model, ffn_hidden)
    w2t = jnp.transpose(w2).astype(cdt)                 # (ffn_hidden, d_model)
    x2d = x.reshape(n, d_model).astype(cdt)
    b1_2d = b1.astype(jnp.float32).reshape(1, ffn_hidden)
    b2_2d = b2.astype(jnp.float32).reshape(1, d_model)

    xb = jnp.dtype(cdt).itemsize
    wb = xb
    ob = jnp.dtype(out_dtype).itemsize

    budget = _vmem_budget()
    if row_tile is None or k_tile is None:
        auto_rt, auto_kt = _select_tiles(n, d_model, ffn_hidden, xb, wb, ob, budget)
        if k_tile is None:
            k_tile = auto_kt
        if row_tile is None:
            row_tile = auto_rt
            # v7x megacore: make the "parallel" row axis have >= 2 steps when the
            # auto-selected tile would otherwise cover all rows in one shot.
            if _round_up(n, row_tile) // row_tile == 1 and row_tile >= 512:
                row_tile = _round_up(row_tile // 2, 16)

    assert ffn_hidden % k_tile == 0, "k_tile must divide ffn_hidden"
    n_pad = _round_up(n, row_tile)
    if n_pad != n:
        x2d = jnp.pad(x2d, ((0, n_pad - n), (0, 0)))    # ragged rows: pad, slice later

    grid = (n_pad // row_tile, ffn_hidden // k_tile)

    need = _tile_vmem_bytes(row_tile, k_tile, d_model, xb, wb, ob)
    vmem_limit = int(min(budget, max(8 << 20, need * 5 // 4 + (2 << 20))))

    # Weights are re-streamed once per row tile whenever the k axis is split;
    # with a single (resident) k step they're fetched exactly once.
    weight_passes = grid[0] if grid[1] > 1 else 1
    cost = pl.CostEstimate(
        flops=4 * n_pad * d_model * ffn_hidden,          # two matmuls x 2 flops/MAC
        transcendentals=0,
        bytes_accessed=(x2d.size * xb
                        + weight_passes * (w1t.size + w2t.size) * wb
                        + b1_2d.size * 4 + b2_2d.size * 4
                        + n_pad * d_model * ob))

    out = pl.pallas_call(
        _ffn_kernel,
        out_shape=jax.ShapeDtypeStruct((n_pad, d_model), out_dtype),
        grid_spec=pltpu.PrefetchScalarGridSpec(
            num_scalar_prefetch=0,
            grid=grid,
            in_specs=[
                pl.BlockSpec((row_tile, d_model), lambda i, k: (i, 0)),   # x rows
                pl.BlockSpec((d_model, k_tile), lambda i, k: (0, k)),     # W1^T k-slice
                pl.BlockSpec((1, k_tile), lambda i, k: (0, k)),           # b1 k-slice
                pl.BlockSpec((k_tile, d_model), lambda i, k: (k, 0)),     # W2^T k-slice
                pl.BlockSpec((1, d_model), lambda i, k: (0, 0)),          # b2 (const)
            ],
            out_specs=pl.BlockSpec((row_tile, d_model), lambda i, k: (i, 0)),
            scratch_shapes=[pltpu.VMEM((row_tile, d_model), jnp.float32)],
        ),
        compiler_params=pltpu.CompilerParams(
            dimension_semantics=("parallel", "arbitrary"),
            vmem_limit_bytes=vmem_limit),
        cost_estimate=cost,
    )(x2d, w1t, b1_2d, w2t, b2_2d)

    if n_pad != n:
        out = out[:n]
    return out.reshape(batch, seq, d_model)


def _init_params(key, d_model, ffn_hidden, dtype=jnp.float32):
    """Deterministic nn.Linear-style init: U(-1/sqrt(fan_in), 1/sqrt(fan_in))."""
    k1, k2, k3, k4 = jax.random.split(key, 4)
    bound1 = 1.0 / (d_model ** 0.5)
    bound2 = 1.0 / (ffn_hidden ** 0.5)
    w1 = jax.random.uniform(k1, (ffn_hidden, d_model), dtype, -bound1, bound1)
    b1 = jax.random.uniform(k2, (ffn_hidden,), dtype, -bound1, bound1)
    w2 = jax.random.uniform(k3, (d_model, ffn_hidden), dtype, -bound2, bound2)
    b2 = jax.random.uniform(k4, (d_model,), dtype, -bound2, bound2)
    return w1, b1, w2, b2


if __name__ == "__main__":
    # Small but lane-dense demo shapes (d_model multiple of 128).
    batch, seq, d_model, ffn_hidden = 2, 8, 128, 512

    key = jax.random.PRNGKey(0)
    kx, kp = jax.random.split(key)
    x = jax.random.normal(kx, (batch, seq, d_model), jnp.float32)
    w1, b1, w2, b2 = _init_params(kp, d_model, ffn_hidden)

    # Pure-JAX f32 reference (eval-mode dropout == identity).
    ref = jnp.maximum(x @ w1.T + b1, 0.0) @ w2.T + b2

    # 1) Default path: bf16 MXU inputs, f32 accumulation, auto tiles
    #    (weights-resident here: grid k axis collapses to a single step).
    y = positionwise_ffn(x, w1, b1, w2, b2)
    y = jax.block_until_ready(y)
    assert y.shape == (batch, seq, d_model)
    assert jnp.allclose(y, ref, atol=3e-2, rtol=3e-2), \
        float(jnp.max(jnp.abs(y - ref)))

    # 2) f32 path with forced small tiles -> grid (2, 4): exercises the parallel
    #    row axis and the k-accumulation (init / accumulate / finalize) path.
    y32 = positionwise_ffn(x, w1, b1, w2, b2, row_tile=8, k_tile=128,
                           compute_dtype=jnp.float32)
    y32 = jax.block_until_ready(y32)
    assert jnp.allclose(y32, ref, atol=1e-4, rtol=1e-4), \
        float(jnp.max(jnp.abs(y32 - ref)))

    print("KERNEL_OK")
</pallas_src>

<mosaic_0001>
module attributes {stable_mosaic.version = 11 : i64} {
  func.func @_ffn_kernel(%arg0: i32, %arg1: i32, %arg2: memref<16x128xbf16, #tpu.memory_space<vmem>>, %arg3: memref<128x512xbf16, #tpu.memory_space<vmem>>, %arg4: memref<1x512xf32, #tpu.memory_space<vmem>>, %arg5: memref<512x128xbf16, #tpu.memory_space<vmem>>, %arg6: memref<1x128xf32, #tpu.memory_space<vmem>>, %arg7: memref<16x128xf32, #tpu.memory_space<vmem>>, %arg8: memref<16x128xf32, #tpu.memory_space<vmem>>) attributes {dimension_semantics = [#tpu.dimension_semantics<parallel>, #tpu.dimension_semantics<arbitrary>], iteration_bounds = array<i64: 1, 1>, scalar_prefetch = 0 : i64, scratch_operands = 1 : i64, tpu.core_type = #tpu.core_type<tc>, window_params = [{transform_indices = @transform_0, window_bounds = array<i64: 16, 128>}, {transform_indices = @transform_1, window_bounds = array<i64: 128, 512>}, {transform_indices = @transform_2, window_bounds = array<i64: 1, 512>}, {transform_indices = @transform_3, window_bounds = array<i64: 512, 128>}, {pipeline_mode = #tpu.pipeline_mode<synchronous>, transform_indices = @transform_4, window_bounds = array<i64: 1, 128>}, {transform_indices = @transform_5, window_bounds = array<i64: 16, 128>}]} {
    %c0_i32 = arith.constant 0 : i32
    %0 = arith.cmpi eq, %arg1, %c0_i32 : i32
    %1 = arith.extui %0 : i1 to i32
    %c0_i32_0 = arith.constant 0 : i32
    %2 = arith.cmpi ne, %1, %c0_i32_0 : i32
    scf.if %2 {
      %c0_16 = arith.constant 0 : index
      %c0_17 = arith.constant 0 : index
      %20 = vector.load %arg6[%c0_16, %c0_17] : memref<1x128xf32, #tpu.memory_space<vmem>>, vector<1x128xf32>
      %21 = vector.shape_cast %20 : vector<1x128xf32> to vector<1x128xf32>
      %22 = vector.broadcast %21 : vector<1x128xf32> to vector<16x128xf32>
      %c0_18 = arith.constant 0 : index
      %c0_19 = arith.constant 0 : index
      %23 = vector.load %arg8[%c0_18, %c0_19] : memref<16x128xf32, #tpu.memory_space<vmem>>, vector<16x128xf32>
      tpu.vector_store %arg8[%c0_18, %c0_19], %22 {strides = array<i32>} : memref<16x128xf32, #tpu.memory_space<vmem>>, vector<16x128xf32>,
    } else {
    }
    %c0 = arith.constant 0 : index
    %c0_1 = arith.constant 0 : index
    %3 = vector.load %arg2[%c0, %c0_1] : memref<16x128xbf16, #tpu.memory_space<vmem>>, vector<16x128xbf16>
    %c0_2 = arith.constant 0 : index
    %c0_3 = arith.constant 0 : index
    %4 = vector.load %arg3[%c0_2, %c0_3] : memref<128x512xbf16, #tpu.memory_space<vmem>>, vector<128x512xbf16>
    %cst = arith.constant dense<0.000000e+00> : vector<16x512xf32>
    %5 = tpu.matmul %3, %4, %cst {dimension_numbers = #tpu.dot_dimension_numbers<[1], [0], [0], [1], [0, 0, 1, 1], [], []>} : vector<16x128xbf16>, vector<128x512xbf16>, vector<16x512xf32> -> vector<16x512xf32>
    %c0_4 = arith.constant 0 : index
    %c0_5 = arith.constant 0 : index
    %6 = vector.load %arg4[%c0_4, %c0_5] : memref<1x512xf32, #tpu.memory_space<vmem>>, vector<1x512xf32>
    %7 = vector.broadcast %6 : vector<1x512xf32> to vector<16x512xf32>
    %8 = arith.addf %5, %7 : vector<16x512xf32>
    %cst_6 = arith.constant 0.000000e+00 : f32
    %9 = vector.broadcast %cst_6 : f32 to vector<16x512xf32>
    %10 = arith.maximumf %8, %9 : vector<16x512xf32>
    %c0_7 = arith.constant 0 : index
    %c0_8 = arith.constant 0 : index
    %11 = vector.load %arg8[%c0_7, %c0_8] : memref<16x128xf32, #tpu.memory_space<vmem>>, vector<16x128xf32>
    %12 = arith.truncf %10 : vector<16x512xf32> to vector<16x512xbf16>
    %c0_9 = arith.constant 0 : index
    %c0_10 = arith.constant 0 : index
    %13 = vector.load %arg5[%c0_9, %c0_10] : memref<512x128xbf16, #tpu.memory_space<vmem>>, vector<512x128xbf16>
    %cst_11 = arith.constant dense<0.000000e+00> : vector<16x128xf32>
    %14 = tpu.matmul %12, %13, %cst_11 {dimension_numbers = #tpu.dot_dimension_numbers<[1], [0], [0], [1], [0, 0, 1, 1], [], []>} : vector<16x512xbf16>, vector<512x128xbf16>, vector<16x128xf32> -> vector<16x128xf32>
    %15 = arith.addf %11, %14 : vector<16x128xf32>
    %c0_12 = arith.constant 0 : index
    %c0_13 = arith.constant 0 : index
    %16 = vector.load %arg8[%c0_12, %c0_13] : memref<16x128xf32, #tpu.memory_space<vmem>>, vector<16x128xf32>
    tpu.vector_store %arg8[%c0_12, %c0_13], %15 {strides = array<i32>} : memref<16x128xf32, #tpu.memory_space<vmem>>, vector<16x128xf32>,
    %c0_i32_14 = arith.constant 0 : i32
    %17 = arith.cmpi eq, %arg1, %c0_i32_14 : i32
    %18 = arith.extui %17 : i1 to i32
    %c0_i32_15 = arith.constant 0 : i32
    %19 = arith.cmpi ne, %18, %c0_i32_15 : i32
    scf.if %19 {
      %c0_16 = arith.constant 0 : index
      %c0_17 = arith.constant 0 : index
      %20 = vector.load %arg8[%c0_16, %c0_17] : memref<16x128xf32, #tpu.memory_space<vmem>>, vector<16x128xf32>
      %c0_18 = arith.constant 0 : index
      %c0_19 = arith.constant 0 : index
      %21 = vector.load %arg7[%c0_18, %c0_19] : memref<16x128xf32, #tpu.memory_space<vmem>>, vector<16x128xf32>
      tpu.vector_store %arg7[%c0_18, %c0_19], %20 {strides = array<i32>} : memref<16x128xf32, #tpu.memory_space<vmem>>, vector<16x128xf32>,
    } else {
    }
    return
  }
  func.func @transform_0(%arg0: i32, %arg1: i32) -> (i32, i32) {
    %c0_i32 = arith.constant 0 : i32
    %c0_i32_0 = arith.constant 0 : i32
    return %arg0, %c0_i32 : i32, i32
  }
  func.func @transform_1(%arg0: i32, %arg1: i32) -> (i32, i32) {
    %c0_i32 = arith.constant 0 : i32
    %c0_i32_0 = arith.constant 0 : i32
    return %c0_i32, %arg1 : i32, i32
  }
  func.func @transform_2(%arg0: i32, %arg1: i32) -> (i32, i32) {
    %c0_i32 = arith.constant 0 : i32
    %c0_i32_0 = arith.constant 0 : i32
    return %c0_i32, %arg1 : i32, i32
  }
  func.func @transform_3(%arg0: i32, %arg1: i32) -> (i32, i32) {
    %c0_i32 = arith.constant 0 : i32
    %c0_i32_0 = arith.constant 0 : i32
    return %arg1, %c0_i32 : i32, i32
  }
  func.func @transform_4(%arg0: i32, %arg1: i32) -> (i32, i32) {
    %c0_i32 = arith.constant 0 : i32
    %c0_i32_0 = arith.constant 0 : i32
    %c0_i32_1 = arith.constant 0 : i32
    return %c0_i32, %c0_i32_0 : i32, i32
  }
  func.func @transform_5(%arg0: i32, %arg1: i32) -> (i32, i32) {
    %c0_i32 = arith.constant 0 : i32
    %c0_i32_0 = arith.constant 0 : i32
    return %arg0, %c0_i32 : i32, i32
  }
}

</mosaic_0001>

<llo_original>
// kernel: tpu_custom_call.1
$region0: #{tpu_custom_call.1}
  #allocation0 [shape = 'u32[]', space=smem, size = 0x4, offset = 0x4, fixed_abs, tag = 'smem constant byte address 0x4 - core index']
  #allocation1 [shape = 'u32[144,128]{1,0:T(1,128)}', space=vmem, size = 0x12000, scoped, tag = 'internal scratch']
  #allocation2 [shape = 'f32[16,128]{1,0:T(8,128)}', space=vmem, size = 0x2000, scoped, tag = 'scratch operand']
  %s0 = inlined_call_operand.hbm [shape: bf16[16,128], index: 0, kind: input, shape index: {}]
  %s1 = inlined_call_operand.hbm [shape: bf16[128,512], index: 1, kind: input, shape index: {}]
  %s2 = inlined_call_operand.hbm [shape: f32[1,512], index: 2, kind: input, shape index: {}]
  %s3 = inlined_call_operand.hbm [shape: bf16[512,128], index: 3, kind: input, shape index: {}]
  %s4 = inlined_call_operand.vmem [shape: f32[1,128], index: 4, kind: input, shape index: {}]
  %s5 = inlined_call_operand.hbm [shape: f32[16,128], index: 5, kind: output, shape index: {}]
  %s6 = sld [smem:[#allocation0]]
  $region54: #{tpu_custom_call.1} parent=0
    _
  %s8 = ssub.s32 1, %s6
  %s9 = scalar_select 0, %s8, %s6
  $region1: #{tpu_custom_call.1} parent=0
    #allocation3 [shape = 'u8[4096]{0}', space=vmem, size = 0x1000, scoped, tag = 'input window, operand 0, single buffered']
    #allocation4 [shape = 's32[1]{0}', space=sflag, size = 0x4, scoped, tag = 'scoped memory for tpu_custom_call.1']
    #allocation5 [shape = 's32[1]{0}', space=sflag, size = 0x4, scoped, tag = 'scoped memory for tpu_custom_call.1']
    #allocation6 [shape = 'u8[131072]{0}', space=vmem, size = 0x20000, scoped, tag = 'input window, operand 1, single buffered']
    #allocation7 [shape = 's32[1]{0}', space=sflag, size = 0x4, scoped, tag = 'scoped memory for tpu_custom_call.1']
    #allocation8 [shape = 'u8[2048]{0}', space=vmem, size = 0x800, scoped, tag = 'input window, operand 2, single buffered']
    #allocation9 [shape = 'u8[131072]{0}', space=vmem, size = 0x20000, scoped, tag = 'input window, operand 3, single buffered']
    #allocation10 [shape = 's32[1]{0}', space=sflag, size = 0x4, scoped, tag = 'scoped memory for tpu_custom_call.1']
    #allocation11 [shape = 'u8[8192]{0}', space=vmem, size = 0x2000, scoped, tag = 'output window, operand 0, single buffered']
    %10 = vsyncpa [#allocation4], 0
    %11 = vsyncpa [#allocation7], 0
    %12 = vsyncpa [#allocation10], 0
    %13 = vsyncpa [#allocation5], 0
    // Predicated region
    $region2: #{tpu_custom_call.1} parent=1 // pred_check
      _
    $region3: #{tpu_custom_call.1} parent=1 // pred_check_branch
      %15 = sbr.rel (0) target = $region5
    $region4: #{tpu_custom_call.1} parent=1 // pred_region
      %s17 = ssub.s32 128, 128
      %18 = vsyncadd [#allocation4], %s17
      %s19 = sshll.u32 [#allocation3], 4
      %s20 = int_to_ptr.vmem [resolvable:$true] %s19
      %25 = dma.hbm_to_vmem [thread:$0]  %s0, 128, %s20, [#allocation4], 64, 64, 4
    $region5: #{tpu_custom_call.1} parent=1 // pred_fallthru
      _
    // Predicated region
    $region6: #{tpu_custom_call.1} parent=1 // pred_check
      _
    $region7: #{tpu_custom_call.1} parent=1 // pred_check_branch
      %27 = sbr.rel (0) target = $region9
    $region8: #{tpu_custom_call.1} parent=1 // pred_region
      %s29 = ssub.s32 4096, 4096
      %30 = vsyncadd [#allocation7], %s29
      %s31 = sshll.u32 [#allocation6], 4
      %s32 = int_to_ptr.vmem [resolvable:$true] %s31
      %37 = dma.hbm_to_vmem [thread:$0]  %s1, 4096, %s32, [#allocation7], 256, 256, 16
    $region9: #{tpu_custom_call.1} parent=1 // pred_fallthru
      _
    // Predicated region
    $region10: #{tpu_custom_call.1} parent=1 // pred_check
      _
    $region11: #{tpu_custom_call.1} parent=1 // pred_check_branch
      %39 = sbr.rel (0) target = $region13
    $region12: #{tpu_custom_call.1} parent=1 // pred_region
      %s41 = ssub.s32 64, 64
      %42 = vsyncadd [#allocation7], %s41
      %s44 = sshll.u32 [#allocation8], 4
      %s45 = int_to_ptr.vmem [resolvable:$true] %s44
      %47 = dma.hbm_to_vmem [thread:$0]  %s2, 64, %s45, [#allocation7]
    $region13: #{tpu_custom_call.1} parent=1 // pred_fallthru
      _
    // Predicated region
    $region14: #{tpu_custom_call.1} parent=1 // pred_check
      _
    $region15: #{tpu_custom_call.1} parent=1 // pred_check_branch
      %49 = sbr.rel (0) target = $region17
    $region16: #{tpu_custom_call.1} parent=1 // pred_region
      %s51 = ssub.s32 4096, 4096
      %52 = vsyncadd [#allocation10], %s51
      %s53 = sshll.u32 [#allocation9], 4
      %s54 = int_to_ptr.vmem [resolvable:$true] %s53
      %59 = dma.hbm_to_vmem [thread:$0]  %s3, 4096, %s54, [#allocation10], 64, 64, 4
    $region17: #{tpu_custom_call.1} parent=1 // pred_fallthru
      _
    // Predicated region
    $region18: #{tpu_custom_call.1} parent=1 // pred_check
      _
    $region19: #{tpu_custom_call.1} parent=1 // pred_check_branch
      %61 = sbr.rel (0) target = $region21
    $region20: #{tpu_custom_call.1} parent=1 // pred_region
      _
    $region21: #{tpu_custom_call.1} parent=1 // pred_fallthru
      _
    // Predicated region
    $region22: #{tpu_custom_call.1} parent=1 // pred_check
      _
    $region23: #{tpu_custom_call.1} parent=1 // pred_check_branch
      %63 = sbr.rel (0) target = $region25
    $region24: #{tpu_custom_call.1} parent=1 // pred_region
      %64 = dma.done [#allocation4], 128
    $region25: #{tpu_custom_call.1} parent=1 // pred_fallthru
      _
    // Predicated region
    $region26: #{tpu_custom_call.1} parent=1 // pred_check
      _
    $region27: #{tpu_custom_call.1} parent=1 // pred_check_branch
      %66 = sbr.rel (0) target = $region29
    $region28: #{tpu_custom_call.1} parent=1 // pred_region
      %67 = dma.done [#allocation7], 4096
    $region29: #{tpu_custom_call.1} parent=1 // pred_fallthru
      _
    // Predicated region
    $region30: #{tpu_custom_call.1} parent=1 // pred_check
      _
    $region31: #{tpu_custom_call.1} parent=1 // pred_check_branch
      %69 = sbr.rel (0) target = $region33
    $region32: #{tpu_custom_call.1} parent=1 // pred_region
      %70 = dma.done [#allocation7], 64
    $region33: #{tpu_custom_call.1} parent=1 // pred_fallthru
      _
    // Predicated region
    $region34: #{tpu_custom_call.1} parent=1 // pred_check
      _
    $region35: #{tpu_custom_call.1} parent=1 // pred_check_branch
      %72 = sbr.rel (0) target = $region37
    $region36: #{tpu_custom_call.1} parent=1 // pred_region
      %73 = dma.done [#allocation10], 4096
    $region37: #{tpu_custom_call.1} parent=1 // pred_fallthru
      _
    %p75 = scmp.eq.s32.totalorder 0, 0
    // Predicated region
    $region38: #{tpu_custom_call.1} parent=1 // pred_check
      %p76 = pneg %p75
    $region39: #{tpu_custom_call.1} parent=1 // pred_check_branch
      %78 = sbr.rel (%p76) target = $region41
    $region40: #{tpu_custom_call.1} parent=1 // pred_region
      %v79 = vld [vmem:[%s4] sm:$0x1]
      %v81 = vlaneseq
      %v82 = vshrl.u32 %v81, 7
      %v83 = vsub.s32 0, %v82
      %v84 = vrot.slane %v79, %v83
      %86 = vst [vmem:[#allocation2] sm:$0xff] %v84
      %87 = vst [vmem:[#allocation2 + $0x8] sm:$0xff] %v84
    $region41: #{tpu_custom_call.1} parent=1 // pred_fallthru
      _
    %v88 = vld [vmem:[#allocation3] sm:$0xf]
    %v89 = vld [vmem:[#allocation3 + $0x4] sm:$0xf]
    %v90 = vld [vmem:[#allocation6] sm:$0xff]
    %v91 = vld [vmem:[#allocation6 + $0x8] sm:$0xff]
    %v92 = vld [vmem:[#allocation6 + $0x10] sm:$0xff]
    %v93 = vld [vmem:[#allocation6 + $0x18] sm:$0xff]
    %v94 = vld [vmem:[#allocation6 + $0x20] sm:$0xff]
    %v95 = vld [vmem:[#allocation6 + $0x28] sm:$0xff]
    %v96 = vld [vmem:[#allocation6 + $0x30] sm:$0xff]
    %v97 = vld [vmem:[#allocation6 + $0x38] sm:$0xff]
    %v98 = vld [vmem:[#allocation6 + $0x40] sm:$0xff]
    %v99 = vld [vmem:[#allocation6 + $0x48] sm:$0xff]
    %v100 = vld [vmem:[#allocation6 + $0x50] sm:$0xff]
    %v101 = vld [vmem:[#allocation6 + $0x58] sm:$0xff]
    %v102 = vld [vmem:[#allocation6 + $0x60] sm:$0xff]
    %v103 = vld [vmem:[#allocation6 + $0x68] sm:$0xff]
    %v104 = vld [vmem:[#allocation6 + $0x70] sm:$0xff]
    %v105 = vld [vmem:[#allocation6 + $0x78] sm:$0xff]
    %v106 = vld [vmem:[#allocation6 + $0x80] sm:$0xff]
    %v107 = vld [vmem:[#allocation6 + $0x88] sm:$0xff]
    %v108 = vld [vmem:[#allocation6 + $0x90] sm:$0xff]
    %v109 = vld [vmem:[#allocation6 + $0x98] sm:$0xff]
    %v110 = vld [vmem:[#allocation6 + $0xa0] sm:$0xff]
    %v111 = vld [vmem:[#allocation6 + $0xa8] sm:$0xff]
    %v112 = vld [vmem:[#allocation6 + $0xb0] sm:$0xff]
    %v113 = vld [vmem:[#allocation6 + $0xb8] sm:$0xff]
    %v114 = vld [vmem:[#allocation6 + $0xc0] sm:$0xff]
    %v115 = vld [vmem:[#allocation6 + $0xc8] sm:$0xff]
    %v116 = vld [vmem:[#allocation6 + $0xd0] sm:$0xff]
    %v117 = vld [vmem:[#allocation6 + $0xd8] sm:$0xff]
    %v118 = vld [vmem:[#allocation6 + $0xe0] sm:$0xff]
    %v119 = vld [vmem:[#allocation6 + $0xe8] sm:$0xff]
    %v120 = vld [vmem:[#allocation6 + $0xf0] sm:$0xff]
    %v121 = vld [vmem:[#allocation6 + $0xf8] sm:$0xff]
    %v122 = vld [vmem:[#allocation8] sm:$0xf]
    %v124 = vlaneseq
    %v125 = vshrl.u32 %v124, 7
    %v126 = vsub.s32 0, %v125
    %v127 = vrot.slane %v122, %v126
    %v128 = vlaneseq
    %v129 = vshrl.u32 %v128, 7
    %v130 = vsub.s32 1, %v129
    %v131 = vrot.slane %v122, %v130
    %v132 = vlaneseq
    %v133 = vshrl.u32 %v132, 7
    %v134 = vsub.s32 2, %v133
    %v135 = vrot.slane %v122, %v134
    %v136 = vlaneseq
    %v137 = vshrl.u32 %v136, 7
    %v138 = vsub.s32 3, %v137
    %v139 = vrot.slane %v122, %v138
    %v146 = vunpack.c.l.b16 %v88
    %v147 = vunpack.c.l.b16 %v89
    %v148 = vpack.c.b16 %v147, %v146
    %v182 = vunpack.c.l.b16 %v90
    %v183 = vunpack.c.h.b16 %v90
    %v184 = vunpack.c.l.b16 %v91
    %v185 = vunpack.c.h.b16 %v91
    %v186 = vunpack.c.l.b16 %v92
    %v187 = vunpack.c.h.b16 %v92
    %v188 = vunpack.c.l.b16 %v93
    %v189 = vunpack.c.h.b16 %v93
    %v190 = vunpack.c.l.b16 %v94
    %v191 = vunpack.c.h.b16 %v94
    %v192 = vunpack.c.l.b16 %v95
    %v193 = vunpack.c.h.b16 %v95
    %v194 = vunpack.c.l.b16 %v96
    %v195 = vunpack.c.h.b16 %v96
    %v196 = vunpack.c.l.b16 %v97
    %v197 = vunpack.c.h.b16 %v97
    %v198 = vunpack.c.l.b16 %v98
    %v199 = vunpack.c.h.b16 %v98
    %v200 = vunpack.c.l.b16 %v99
    %v201 = vunpack.c.h.b16 %v99
    %v202 = vunpack.c.l.b16 %v100
    %v203 = vunpack.c.h.b16 %v100
    %v204 = vunpack.c.l.b16 %v101
    %v205 = vunpack.c.h.b16 %v101
    %v206 = vunpack.c.l.b16 %v102
    %v207 = vunpack.c.h.b16 %v102
    %v208 = vunpack.c.l.b16 %v103
    %v209 = vunpack.c.h.b16 %v103
    %v210 = vunpack.c.l.b16 %v104
    %v211 = vunpack.c.h.b16 %v104
    %v212 = vunpack.c.l.b16 %v105
    %v213 = vunpack.c.h.b16 %v105
    %v214 = vunpack.c.l.b16 %v106
    %v215 = vunpack.c.h.b16 %v106
    %v216 = vunpack.c.l.b16 %v107
    %v217 = vunpack.c.h.b16 %v107
    %v218 = vunpack.c.l.b16 %v108
    %v219 = vunpack.c.h.b16 %v108
    %v220 = vunpack.c.l.b16 %v109
    %v221 = vunpack.c.h.b16 %v109
    %v222 = vunpack.c.l.b16 %v110
    %v223 = vunpack.c.h.b16 %v110
    %v224 = vunpack.c.l.b16 %v111
    %v225 = vunpack.c.h.b16 %v111
    %v226 = vunpack.c.l.b16 %v112
    %v227 = vunpack.c.h.b16 %v112
    %v228 = vunpack.c.l.b16 %v113
    %v229 = vunpack.c.h.b16 %v113
    %v230 = vunpack.c.l.b16 %v114
    %v231 = vunpack.c.h.b16 %v114
    %v232 = vunpack.c.l.b16 %v115
    %v233 = vunpack.c.h.b16 %v115
    %v234 = vunpack.c.l.b16 %v116
    %v235 = vunpack.c.h.b16 %v116
    %v236 = vunpack.c.l.b16 %v117
    %v237 = vunpack.c.h.b16 %v117
    %v238 = vunpack.c.l.b16 %v118
    %v239 = vunpack.c.h.b16 %v118
    %v240 = vunpack.c.l.b16 %v119
    %v241 = vunpack.c.h.b16 %v119
    %v242 = vunpack.c.l.b16 %v120
    %v243 = vunpack.c.h.b16 %v120
    %v244 = vunpack.c.l.b16 %v121
    %v245 = vunpack.c.h.b16 %v121
    %v246 = vpack.c.b16 %v186, %v182
    %v247 = vpack.c.b16 %v187, %v183
    %v248 = vpack.c.b16 %v188, %v184
    %v249 = vpack.c.b16 %v189, %v185
    %v250 = vpack.c.b16 %v194, %v190
    %v251 = vpack.c.b16 %v195, %v191
    %v252 = vpack.c.b16 %v196, %v192
    %v253 = vpack.c.b16 %v197, %v193
    %v254 = vpack.c.b16 %v202, %v198
    %v255 = vpack.c.b16 %v203, %v199
    %v256 = vpack.c.b16 %v204, %v200
    %v257 = vpack.c.b16 %v205, %v201
    %v258 = vpack.c.b16 %v210, %v206
    %v259 = vpack.c.b16 %v211, %v207
    %v260 = vpack.c.b16 %v212, %v208
    %v261 = vpack.c.b16 %v213, %v209
    %v262 = vpack.c.b16 %v218, %v214
    %v263 = vpack.c.b16 %v219, %v215
    %v264 = vpack.c.b16 %v220, %v216
    %v265 = vpack.c.b16 %v221, %v217
    %v266 = vpack.c.b16 %v226, %v222
    %v267 = vpack.c.b16 %v227, %v223
    %v268 = vpack.c.b16 %v228, %v224
    %v269 = vpack.c.b16 %v229, %v225
    %v270 = vpack.c.b16 %v234, %v230
    %v271 = vpack.c.b16 %v235, %v231
    %v272 = vpack.c.b16 %v236, %v232
    %v273 = vpack.c.b16 %v237, %v233
    %v274 = vpack.c.b16 %v242, %v238
    %v275 = vpack.c.b16 %v243, %v239
    %v276 = vpack.c.b16 %v244, %v240
    %v277 = vpack.c.b16 %v245, %v241
    %310 = vmatprep.subr.bf16.mxu0 %v275
    %311 = vmatpush1.bf16.msra.mxu0 %v274
    %312 = vmatprep.subr.bf16.mxu0 %v271
    %313 = vmatpush1.bf16.msra.mxu0 %v270
    %314 = vmatprep.subr.bf16.mxu0 %v267
    %315 = vmatpush1.bf16.msra.mxu0 %v266
    %316 = vmatprep.subr.bf16.mxu0 %v263
    %317 = vmatpush1.bf16.msra.mxu0 %v262
    %318 = vmatprep.subr.bf16.mxu0 %v259
    %319 = vmatpush1.bf16.msra.mxu0 %v258
    %320 = vmatprep.subr.bf16.mxu0 %v255
    %321 = vmatpush1.bf16.msra.mxu0 %v254
    %322 = vmatprep.subr.bf16.mxu0 %v251
    %323 = vmatpush1.bf16.msra.mxu0 %v250
    %324 = vmatprep.subr.bf16.mxu0 %v247
    %325 = vmatpush1.bf16.msra.mxu0 %v246
    %326 = vmatprep.subr.bf16.mxu0 0
    %327 = vmatpush2.bf16.msra.mxu0 0
    %328 = vmatprep.subr.bf16.mxu0 0
    %329 = vmatpush2.bf16.msra.mxu0 0
    %330 = vmatprep.subr.bf16.mxu0 0
    %331 = vmatpush2.bf16.msra.mxu0 0
    %332 = vmatprep.subr.bf16.mxu0 0
    %333 = vmatpush2.bf16.msra.mxu0 0
    %334 = vmatprep.subr.bf16.mxu0 0
    %335 = vmatpush2.bf16.msra.mxu0 0
    %336 = vmatprep.subr.bf16.mxu0 0
    %337 = vmatpush2.bf16.msra.mxu0 0
    %338 = vmatprep.subr.bf16.mxu0 0
    %339 = vmatpush2.bf16.msra.mxu0 0
    %340 = vmatprep.subr.bf16.mxu0 0
    %341 = vmatpush2.bf16.msra.mxu0 0
    %342 = vmatprep.mubr.bf16.mxu0 0
    %343 = vmatmul.mubr.bf16.gmra.mxu0 %v148
    %v344 = vpop.f32.mrf.mxu0
    %v345 = vadd.f32 %v127, %v344
    %v346 = vpop.f32.mrf.mxu0
    %v347 = vadd.f32 %v131, %v346
    %v348 = vpop.f32.mrf.mxu0
    %v349 = vadd.f32 %v127, %v348
    %v350 = vpop.f32.mrf.mxu0
    %v351 = vadd.f32 %v131, %v350
    %352 = vdwg.mxu0
    %353 = vmatprep.subr.bf16.mxu0 %v277
    %354 = vmatpush1.bf16.msra.mxu0 %v276
    %355 = vmatprep.subr.bf16.mxu0 %v273
    %356 = vmatpush1.bf16.msra.mxu0 %v272
    %357 = vmatprep.subr.bf16.mxu0 %v269
    %358 = vmatpush1.bf16.msra.mxu0 %v268
    %359 = vmatprep.subr.bf16.mxu0 %v265
    %360 = vmatpush1.bf16.msra.mxu0 %v264
    %361 = vmatprep.subr.bf16.mxu0 %v261
    %362 = vmatpush1.bf16.msra.mxu0 %v260
    %363 = vmatprep.subr.bf16.mxu0 %v257
    %364 = vmatpush1.bf16.msra.mxu0 %v256
    %365 = vmatprep.subr.bf16.mxu0 %v253
    %366 = vmatpush1.bf16.msra.mxu0 %v252
    %367 = vmatprep.subr.bf16.mxu0 %v249
    %368 = vmatpush1.bf16.msra.mxu0 %v248
    %369 = vmatprep.subr.bf16.mxu0 0
    %370 = vmatpush2.bf16.msra.mxu0 0
    %371 = vmatprep.subr.bf16.mxu0 0
    %372 = vmatpush2.bf16.msra.mxu0 0
    %373 = vmatprep.subr.bf16.mxu0 0
    %374 = vmatpush2.bf16.msra.mxu0 0
    %375 = vmatprep.subr.bf16.mxu0 0
    %376 = vmatpush2.bf16.msra.mxu0 0
    %377 = vmatprep.subr.bf16.mxu0 0
    %378 = vmatpush2.bf16.msra.mxu0 0
    %379 = vmatprep.subr.bf16.mxu0 0
    %380 = vmatpush2.bf16.msra.mxu0 0
    %381 = vmatprep.subr.bf16.mxu0 0
    %382 = vmatpush2.bf16.msra.mxu0 0
    %383 = vmatprep.subr.bf16.mxu0 0
    %384 = vmatpush2.bf16.msra.mxu0 0
    %385 = vmatprep.mubr.bf16.mxu0 0
    %386 = vmatmul.mubr.bf16.gmra.mxu0 %v148
    %v387 = vpop.f32.mrf.mxu0
    %v388 = vadd.f32 %v135, %v387
    %v389 = vpop.f32.mrf.mxu0
    %v390 = vadd.f32 %v139, %v389
    %v391 = vpop.f32.mrf.mxu0
    %v392 = vadd.f32 %v135, %v391
    %v393 = vpop.f32.mrf.mxu0
    %v394 = vadd.f32 %v139, %v393
    %395 = vdwg.mxu0
    %v396 = vmax.f32 %v345, 0.0
    %v397 = vmax.f32 %v347, 0.0
    %v398 = vmax.f32 %v388, 0.0
    %v399 = vmax.f32 %v390, 0.0
    %v400 = vmax.f32 %v349, 0.0
    %v401 = vmax.f32 %v351, 0.0
    %v402 = vmax.f32 %v392, 0.0
    %v403 = vmax.f32 %v394, 0.0
    %v404 = vld [vmem:[#allocation2] sm:$0xff]
    %v405 = vld [vmem:[#allocation2 + $0x8] sm:$0xff]
    %v406 = vpack.c.bf16 %v400, %v396
    %v407 = vpack.c.bf16 %v401, %v397
    %v408 = vpack.c.bf16 %v402, %v398
    %v409 = vpack.c.bf16 %v403, %v399
    %v410 = vld [vmem:[#allocation9] sm:$0xf]
    %v411 = vld [vmem:[#allocation9 + $0x4] sm:$0xf]
    %v412 = vld [vmem:[#allocation9 + $0x8] sm:$0xf]
    %v413 = vld [vmem:[#allocation9 + $0xc] sm:$0xf]
    %v414 = vld [vmem:[#allocation9 + $0x10] sm:$0xf]
    %v415 = vld [vmem:[#allocation9 + $0x14] sm:$0xf]
    %v416 = vld [vmem:[#allocation9 + $0x18] sm:$0xf]
    %v417 = vld [vmem:[#allocation9 + $0x1c] sm:$0xf]
    %v418 = vld [vmem:[#allocation9 + $0x20] sm:$0xf]
    %v419 = vld [vmem:[#allocation9 + $0x24] sm:$0xf]
    %v420 = vld [vmem:[#allocation9 + $0x28] sm:$0xf]
    %v421 = vld [vmem:[#allocation9 + $0x2c] sm:$0xf]
    %v422 = vld [vmem:[#allocation9 + $0x30] sm:$0xf]
    %v423 = vld [vmem:[#allocation9 + $0x34] sm:$0xf]
    %v424 = vld [vmem:[#allocation9 + $0x38] sm:$0xf]
    %v425 = vld [vmem:[#allocation9 + $0x3c] sm:$0xf]
    %v426 = vld [vmem:[#allocation9 + $0x40] sm:$0xf]
    %v427 = vld [vmem:[#allocation9 + $0x44] sm:$0xf]
    %v428 = vld [vmem:[#allocation9 + $0x48] sm:$0xf]
    %v429 = vld [vmem:[#allocation9 + $0x4c] sm:$0xf]
    %v430 = vld [vmem:[#allocation9 + $0x50] sm:$0xf]
    %v431 = vld [vmem:[#allocation9 + $0x54] sm:$0xf]
    %v432 = vld [vmem:[#allocation9 + $0x58] sm:$0xf]
    %v433 = vld [vmem:[#allocation9 + $0x5c] sm:$0xf]
    %v434 = vld [vmem:[#allocation9 + $0x60] sm:$0xf]
    %v435 = vld [vmem:[#allocation9 + $0x64] sm:$0xf]
    %v436 = vld [vmem:[#allocation9 + $0x68] sm:$0xf]
    %v437 = vld [vmem:[#allocation9 + $0x6c] sm:$0xf]
    %v438 = vld [vmem:[#allocation9 + $0x70] sm:$0xf]
    %v439 = vld [vmem:[#allocation9 + $0x74] sm:$0xf]
    %v440 = vld [vmem:[#allocation9 + $0x78] sm:$0xf]
    %v441 = vld [vmem:[#allocation9 + $0x7c] sm:$0xf]
    %v442 = vld [vmem:[#allocation9 + $0x80] sm:$0xf]
    %v443 = vld [vmem:[#allocation9 + $0x84] sm:$0xf]
    %v444 = vld [vmem:[#allocation9 + $0x88] sm:$0xf]
    %v445 = vld [vmem:[#allocation9 + $0x8c] sm:$0xf]
    %v446 = vld [vmem:[#allocation9 + $0x90] sm:$0xf]
    %v447 = vld [vmem:[#allocation9 + $0x94] sm:$0xf]
    %v448 = vld [vmem:[#allocation9 + $0x98] sm:$0xf]
    %v449 = vld [vmem:[#allocation9 + $0x9c] sm:$0xf]
    %v450 = vld [vmem:[#allocation9 + $0xa0] sm:$0xf]
    %v451 = vld [vmem:[#allocation9 + $0xa4] sm:$0xf]
    %v452 = vld [vmem:[#allocation9 + $0xa8] sm:$0xf]
    %v453 = vld [vmem:[#allocation9 + $0xac] sm:$0xf]
    %v454 = vld [vmem:[#allocation9 + $0xb0] sm:$0xf]
    %v455 = vld [vmem:[#allocation9 + $0xb4] sm:$0xf]
    %v456 = vld [vmem:[#allocation9 + $0xb8] sm:$0xf]
    %v457 = vld [vmem:[#allocation9 + $0xbc] sm:$0xf]
    %v458 = vld [vmem:[#allocation9 + $0xc0] sm:$0xf]
    %v459 = vld [vmem:[#allocation9 + $0xc4] sm:$0xf]
    %v460 = vld [vmem:[#allocation9 + $0xc8] sm:$0xf]
    %v461 = vld [vmem:[#allocation9 + $0xcc] sm:$0xf]
    %v462 = vld [vmem:[#allocation9 + $0xd0] sm:$0xf]
    %v463 = vld [vmem:[#allocation9 + $0xd4] sm:$0xf]
    %v464 = vld [vmem:[#allocation9 + $0xd8] sm:$0xf]
    %v465 = vld [vmem:[#allocation9 + $0xdc] sm:$0xf]
    %v466 = vld [vmem:[#allocation9 + $0xe0] sm:$0xf]
    %v467 = vld [vmem:[#allocation9 + $0xe4] sm:$0xf]
    %v468 = vld [vmem:[#allocation9 + $0xe8] sm:$0xf]
    %v469 = vld [vmem:[#allocation9 + $0xec] sm:$0xf]
    %v470 = vld [vmem:[#allocation9 + $0xf0] sm:$0xf]
    %v471 = vld [vmem:[#allocation9 + $0xf4] sm:$0xf]
    %v472 = vld [vmem:[#allocation9 + $0xf8] sm:$0xf]
    %v473 = vld [vmem:[#allocation9 + $0xfc] sm:$0xf]
    %v538 = vunpack.c.l.b16 %v410
    %v539 = vunpack.c.l.b16 %v411
    %v540 = vunpack.c.l.b16 %v412
    %v541 = vunpack.c.l.b16 %v413
    %v542 = vunpack.c.l.b16 %v414
    %v543 = vunpack.c.l.b16 %v415
    %v544 = vunpack.c.l.b16 %v416
    %v545 = vunpack.c.l.b16 %v417
    %v546 = vunpack.c.l.b16 %v418
    %v547 = vunpack.c.l.b16 %v419
    %v548 = vunpack.c.l.b16 %v420
    %v549 = vunpack.c.l.b16 %v421
    %v550 = vunpack.c.l.b16 %v422
    %v551 = vunpack.c.l.b16 %v423
    %v552 = vunpack.c.l.b16 %v424
    %v553 = vunpack.c.l.b16 %v425
    %v554 = vunpack.c.l.b16 %v426
    %v555 = vunpack.c.l.b16 %v427
    %v556 = vunpack.c.l.b16 %v428
    %v557 = vunpack.c.l.b16 %v429
    %v558 = vunpack.c.l.b16 %v430
    %v559 = vunpack.c.l.b16 %v431
    %v560 = vunpack.c.l.b16 %v432
    %v561 = vunpack.c.l.b16 %v433
    %v562 = vunpack.c.l.b16 %v434
    %v563 = vunpack.c.l.b16 %v435
    %v564 = vunpack.c.l.b16 %v436
    %v565 = vunpack.c.l.b16 %v437
    %v566 = vunpack.c.l.b16 %v438
    %v567 = vunpack.c.l.b16 %v439
    %v568 = vunpack.c.l.b16 %v440
    %v569 = vunpack.c.l.b16 %v441
    %v570 = vunpack.c.l.b16 %v442
    %v571 = vunpack.c.l.b16 %v443
    %v572 = vunpack.c.l.b16 %v444
    %v573 = vunpack.c.l.b16 %v445
    %v574 = vunpack.c.l.b16 %v446
    %v575 = vunpack.c.l.b16 %v447
    %v576 = vunpack.c.l.b16 %v448
    %v577 = vunpack.c.l.b16 %v449
    %v578 = vunpack.c.l.b16 %v450
    %v579 = vunpack.c.l.b16 %v451
    %v580 = vunpack.c.l.b16 %v452
    %v581 = vunpack.c.l.b16 %v453
    %v582 = vunpack.c.l.b16 %v454
    %v583 = vunpack.c.l.b16 %v455
    %v584 = vunpack.c.l.b16 %v456
    %v585 = vunpack.c.l.b16 %v457
    %v586 = vunpack.c.l.b16 %v458
    %v587 = vunpack.c.l.b16 %v459
    %v588 = vunpack.c.l.b16 %v460
    %v589 = vunpack.c.l.b16 %v461
    %v590 = vunpack.c.l.b16 %v462
    %v591 = vunpack.c.l.b16 %v463
    %v592 = vunpack.c.l.b16 %v464
    %v593 = vunpack.c.l.b16 %v465
    %v594 = vunpack.c.l.b16 %v466
    %v595 = vunpack.c.l.b16 %v467
    %v596 = vunpack.c.l.b16 %v468
    %v597 = vunpack.c.l.b16 %v469
    %v598 = vunpack.c.l.b16 %v470
    %v599 = vunpack.c.l.b16 %v471
    %v600 = vunpack.c.l.b16 %v472
    %v601 = vunpack.c.l.b16 %v473
    %v602 = vpack.c.b16 %v539, %v538
    %v603 = vpack.c.b16 %v541, %v540
    %v604 = vpack.c.b16 %v543, %v542
    %v605 = vpack.c.b16 %v545, %v544
    %v606 = vpack.c.b16 %v547, %v546
    %v607 = vpack.c.b16 %v549, %v548
    %v608 = vpack.c.b16 %v551, %v550
    %v609 = vpack.c.b16 %v553, %v552
    %v610 = vpack.c.b16 %v555, %v554
    %v611 = vpack.c.b16 %v557, %v556
    %v612 = vpack.c.b16 %v559, %v558
    %v613 = vpack.c.b16 %v561, %v560
    %v614 = vpack.c.b16 %v563, %v562
    %v615 = vpack.c.b16 %v565, %v564
    %v616 = vpack.c.b16 %v567, %v566
    %v617 = vpack.c.b16 %v569, %v568
    %v618 = vpack.c.b16 %v571, %v570
    %v619 = vpack.c.b16 %v573, %v572
    %v620 = vpack.c.b16 %v575, %v574
    %v621 = vpack.c.b16 %v577, %v576
    %v622 = vpack.c.b16 %v579, %v578
    %v623 = vpack.c.b16 %v581, %v580
    %v624 = vpack.c.b16 %v583, %v582
    %v625 = vpack.c.b16 %v585, %v584
    %v626 = vpack.c.b16 %v587, %v586
    %v627 = vpack.c.b16 %v589, %v588
    %v628 = vpack.c.b16 %v591, %v590
    %v629 = vpack.c.b16 %v593, %v592
    %v630 = vpack.c.b16 %v595, %v594
    %v631 = vpack.c.b16 %v597, %v596
    %v632 = vpack.c.b16 %v599, %v598
    %v633 = vpack.c.b16 %v601, %v600
    %666 = vmatprep.subr.bf16.mxu0 0
    %667 = vmatpush1.bf16.msra.mxu0 %v609
    %668 = vmatprep.subr.bf16.mxu0 0
    %669 = vmatpush1.bf16.msra.mxu0 %v608
    %670 = vmatprep.subr.bf16.mxu0 0
    %671 = vmatpush1.bf16.msra.mxu0 %v607
    %672 = vmatprep.subr.bf16.mxu0 0
    %673 = vmatpush1.bf16.msra.mxu0 %v606
    %674 = vmatprep.subr.bf16.mxu0 0
    %675 = vmatpush1.bf16.msra.mxu0 %v605
    %676 = vmatprep.subr.bf16.mxu0 0
    %677 = vmatpush1.bf16.msra.mxu0 %v604
    %678 = vmatprep.subr.bf16.mxu0 0
    %679 = vmatpush1.bf16.msra.mxu0 %v603
    %680 = vmatprep.subr.bf16.mxu0 0
    %681 = vmatpush1.bf16.msra.mxu0 %v602
    %682 = vmatprep.subr.bf16.mxu0 0
    %683 = vmatpush2.bf16.msra.mxu0 %v617
    %684 = vmatprep.subr.bf16.mxu0 0
    %685 = vmatpush2.bf16.msra.mxu0 %v616
    %686 = vmatprep.subr.bf16.mxu0 0
    %687 = vmatpush2.bf16.msra.mxu0 %v615
    %688 = vmatprep.subr.bf16.mxu0 0
    %689 = vmatpush2.bf16.msra.mxu0 %v614
    %690 = vmatprep.subr.bf16.mxu0 0
    %691 = vmatpush2.bf16.msra.mxu0 %v613
    %692 = vmatprep.subr.bf16.mxu0 0
    %693 = vmatpush2.bf16.msra.mxu0 %v612
    %694 = vmatprep.subr.bf16.mxu0 0
    %695 = vmatpush2.bf16.msra.mxu0 %v611
    %696 = vmatprep.subr.bf16.mxu0 0
    %697 = vmatpush2.bf16.msra.mxu0 %v610
    %698 = vmatprep.mubr.bf16.mxu0 %v407
    %699 = vmatmul.mubr.bf16.gmra.mxu0 %v406
    %v700 = vpop.f32.mrf.mxu0
    %v701 = vadd.f32 0.0, %v700
    %v702 = vpop.f32.mrf.mxu0
    %v703 = vpop.f32.mrf.mxu0
    %v704 = vadd.f32 0.0, %v703
    %v705 = vpop.f32.mrf.mxu0
    %706 = vdwg.mxu0
    %707 = vmatprep.subr.bf16.mxu0 0
    %708 = vmatpush1.bf16.msra.mxu0 %v625
    %709 = vmatprep.subr.bf16.mxu0 0
    %710 = vmatpush1.bf16.msra.mxu0 %v624
    %711 = vmatprep.subr.bf16.mxu0 0
    %712 = vmatpush1.bf16.msra.mxu0 %v623
    %713 = vmatprep.subr.bf16.mxu0 0
    %714 = vmatpush1.bf16.msra.mxu0 %v622
    %715 = vmatprep.subr.bf16.mxu0 0
    %716 = vmatpush1.bf16.msra.mxu0 %v621
    %717 = vmatprep.subr.bf16.mxu0 0
    %718 = vmatpush1.bf16.msra.mxu0 %v620
    %719 = vmatprep.subr.bf16.mxu0 0
    %720 = vmatpush1.bf16.msra.mxu0 %v619
    %721 = vmatprep.subr.bf16.mxu0 0
    %722 = vmatpush1.bf16.msra.mxu0 %v618
    %723 = vmatprep.subr.bf16.mxu0 0
    %724 = vmatpush2.bf16.msra.mxu0 %v633
    %725 = vmatprep.subr.bf16.mxu0 0
    %726 = vmatpush2.bf16.msra.mxu0 %v632
    %727 = vmatprep.subr.bf16.mxu0 0
    %728 = vmatpush2.bf16.msra.mxu0 %v631
    %729 = vmatprep.subr.bf16.mxu0 0
    %730 = vmatpush2.bf16.msra.mxu0 %v630
    %731 = vmatprep.subr.bf16.mxu0 0
    %732 = vmatpush2.bf16.msra.mxu0 %v629
    %733 = vmatprep.subr.bf16.mxu0 0
    %734 = vmatpush2.bf16.msra.mxu0 %v628
    %735 = vmatprep.subr.bf16.mxu0 0
    %736 = vmatpush2.bf16.msra.mxu0 %v627
    %737 = vmatprep.subr.bf16.mxu0 0
    %738 = vmatpush2.bf16.msra.mxu0 %v626
    %739 = vmatprep.mubr.bf16.mxu0 %v409
    %740 = vmatmul.mubr.bf16.gmra.mxu0 %v408
    %v741 = vpop.f32.mrf.mxu0
    %v742 = vadd.f32 %v701, %v741
    %v743 = vpop.f32.mrf.mxu0
    %v744 = vpop.f32.mrf.mxu0
    %v745 = vadd.f32 %v704, %v744
    %v746 = vpop.f32.mrf.mxu0
    %747 = vdwg.mxu0
    %v748 = vadd.f32 %v404, %v742
    %v749 = vadd.f32 %v405, %v745
    %750 = vst [vmem:[#allocation2] sm:$0xff] %v748
    %751 = vst [vmem:[#allocation2 + $0x8] sm:$0xff] %v749
    // Predicated region
    $region42: #{tpu_custom_call.1} parent=1 // pred_check
      %p752 = pneg %p75
    $region43: #{tpu_custom_call.1} parent=1 // pred_check_branch
      %754 = sbr.rel (%p752) target = $region45
    $region44: #{tpu_custom_call.1} parent=1 // pred_region
      %v755 = vld [vmem:[#allocation2] sm:$0xff]
      %v756 = vld [vmem:[#allocation2 + $0x8] sm:$0xff]
      %757 = vst [vmem:[#allocation11] sm:$0xff] %v755
      %758 = vst [vmem:[#allocation11 + $0x8] sm:$0xff] %v756
    $region45: #{tpu_custom_call.1} parent=1 // pred_fallthru
      _
    // Predicated region
    $region46: #{tpu_custom_call.1} parent=1 // pred_check
      _
    $region47: #{tpu_custom_call.1} parent=1 // pred_check_branch
      %760 = sbr.rel (0) target = $region49
    $region48: #{tpu_custom_call.1} parent=1 // pred_region
      %s762 = ssub.s32 256, 256
      %763 = vsyncadd [#allocation5], %s762
      %s764 = sshll.u32 [#allocation11], 4
      %s765 = int_to_ptr.vmem [resolvable:$true] %s764
      %770 = dma.vmem_to_hbm [thread:$0]  %s765, 256, %s5, [#allocation5], 128, 128, 8
    $region49: #{tpu_custom_call.1} parent=1 // pred_fallthru
      _
    // Predicated region
    $region50: #{tpu_custom_call.1} parent=1 // pred_check
      _
    $region51: #{tpu_custom_call.1} parent=1 // pred_check_branch
      %772 = sbr.rel (0) target = $region53
    $region52: #{tpu_custom_call.1} parent=1 // pred_region
      %773 = dma.done [#allocation5], 256
    $region53: #{tpu_custom_call.1} parent=1 // pred_fallthru
      _
    %774 = vsyncpa [#allocation4], 1
    %775 = vsyncpa [#allocation7], 1
    %776 = vsyncpa [#allocation10], 1
    %777 = vsyncpa [#allocation5], 1

</llo_original>
